<compile_context>
chip_gen: v6e
topology: v6e:2x2x1
jax: 0.10.0
libtpu: 0.0.40
codegen_flags: <defaults>
</compile_context>

<pallas_src>
import jax
import jax.numpy as jnp
from jax import lax
from jax.experimental import pallas as pl
from jax.experimental.pallas import tpu as pltpu

EPS = 1e-5


# ------------------------------ Pallas kernel --------------------------------
def _resblock_kernel(x_ref, w1_ref, w2_ref, gb_ref, rep_ref, rept_ref, out_ref):
    """Fused ResBlock1 forward.

    x_ref    : (N, H, W*C)  f32   input, channel fastest on the lane axis
    w1/w2    : (3*W*C, W*C) bf16  stacked block-banded conv weights (kh-major)
    gb_ref   : (4, C)       f32   rows: gamma1, beta1, gamma2, beta2
    rep_ref  : (C, W*C)     f32   0/1 channel->lane replication matrix
    rept_ref : (W*C, C)     f32   its transpose (lane->channel fold)
    out_ref  : (N*H, W*C)   f32   lane-dense output (unmasked vst)
    """
    N, H, WC = x_ref.shape
    C = rep_ref.shape[0]
    W = WC // C
    NH = N * H
    inv_count = 1.0 / float(N * H * W)       # samples per channel (training BN)

    x = x_ref[...]                           # (N, H, WC); reused for residual

    def conv3x3(y, w_ref):
        # y: (N, H, WC) f32.  Build the 3-tap slab [row h-1 | row h | row h+1]
        # with zero H-halo rows (built functionally, no scratch zero-fill),
        # then ONE bf16 MXU matmul with K = 3*W*C and f32 accumulation.
        zrow = jnp.zeros((N, 1, WC), jnp.float32)
        up = jnp.concatenate([zrow, y[:, :H - 1, :]], axis=1)   # kh = 0 tap
        dn = jnp.concatenate([y[:, 1:, :], zrow], axis=1)       # kh = 2 tap
        slab = jnp.concatenate([up, y, dn], axis=-1).reshape(NH, 3 * WC)
        return jnp.dot(slab.astype(jnp.bfloat16), w_ref[...],
                       preferred_element_type=jnp.float32)      # (NH, WC) f32

    def batchnorm(y, g, b):
        # Single-pass training-mode BN on (NH, WC); g / b are (1, C), f32.
        s = jnp.sum(y, axis=0, keepdims=True)                   # (1, WC)
        ss = jnp.sum(y * y, axis=0, keepdims=True)              # (1, WC)
        # Fold the W lane replicas of each channel with one tiny f32 matmul.
        stats_c = jnp.dot(jnp.concatenate([s, ss], axis=0), rept_ref[...],
                          preferred_element_type=jnp.float32)   # (2, C)
        mean = stats_c[0:1] * inv_count
        var = stats_c[1:2] * inv_count - mean * mean            # biased var
        inv = lax.rsqrt(var + EPS)
        scale_c = g * inv                                       # (1, C)
        bias_c = b - mean * scale_c                             # (1, C)
        # Replicate per-channel scale & bias onto the (w, c) lane layout with
        # one merged (2, C) @ (C, W*C) matmul (was two 1-row matmuls).
        sb = jnp.dot(jnp.concatenate([scale_c, bias_c], axis=0), rep_ref[...],
                     preferred_element_type=jnp.float32)        # (2, WC)
        return y * sb[0:1] + sb[1:2]                            # dense FMA

    g1, b1 = gb_ref[0:1], gb_ref[1:2]
    g2, b2 = gb_ref[2:3], gb_ref[3:4]

    # ---- conv1 -> bn1 -> relu ------------------------------------------------
    y = jnp.maximum(batchnorm(conv3x3(x, w1_ref), g1, b1), 0.0)

    # ---- conv2 -> bn2 -> +identity -> relu -----------------------------------
    y = batchnorm(conv3x3(y.reshape(N, H, WC), w2_ref), g2, b2)
    out_ref[...] = jnp.maximum(y + x.reshape(NH, WC), 0.0)      # lane-dense store


# ------------------------------ host wrappers ---------------------------------
def _band_matrix(w_oihw, W):
    """PyTorch conv weight (Cout, Cin, 3, 3) -> stacked banded matrix.

    Returns (3*W*Cin, W*Cout), kh-major.  Row block kh, row w_in*Cin + ci,
    column w_out*Cout + co holds w[co, ci, kh, w_in - w_out + 1] when
    |w_in - w_out| <= 1, else 0.  Multiplying the 3-tap concatenated slab
    (N*H, 3*W*Cin) by it performs the W-shift, W zero-padding and Cin->Cout
    channel mixing of the whole 3x3 conv in one MXU contraction.
    """
    c_out, c_in = w_oihw.shape[0], w_oihw.shape[1]
    w_hwio = jnp.transpose(w_oihw, (2, 3, 1, 0))        # (3, 3, Cin, Cout)
    w_in = jnp.arange(W)[:, None]
    w_out = jnp.arange(W)[None, :]
    off = w_in - w_out + 1                              # kw index, (W, W)
    mask = ((off >= 0) & (off <= 2)).astype(w_oihw.dtype)[..., None, None]
    off = jnp.clip(off, 0, 2)
    bands = []
    for kh in range(3):
        blk = w_hwio[kh][off] * mask                    # (W, W, Cin, Cout)
        bands.append(jnp.transpose(blk, (0, 2, 1, 3)).reshape(W * c_in, W * c_out))
    return jnp.concatenate(bands, axis=0)               # (3*W*Cin, W*Cout)


def resblock1_nhwc(x_nhwc, params):
    """ResBlock1 forward on an NHWC tensor (preferred, transpose-free layout)."""
    N, H, W, C = x_nhwc.shape
    assert params["w1"].shape == (C, C, 3, 3), "residual path needs Cin == Cout"
    WC = W * C
    # TODO(synk): if W*C is not a multiple of 128, pad the lane axis in the
    #             wrapper to avoid masked partial stores (perf cliff, not a bug).

    # bf16 MXU operands (weights cast here, activations cast in-kernel).
    w1 = _band_matrix(params["w1"], W).astype(jnp.bfloat16)     # (3*WC, WC)
    w2 = _band_matrix(params["w2"], W).astype(jnp.bfloat16)
    gb = jnp.stack([params["g1"], params["b1"],
                    params["g2"], params["b2"]]).astype(jnp.float32)   # (4, C)
    rep = jnp.tile(jnp.eye(C, dtype=jnp.float32), (1, W))       # (C, WC)
    rep_t = rep.T                                               # (WC, C)

    x_flat = x_nhwc.reshape(N, H, WC).astype(jnp.float32)
    vmem = pl.BlockSpec(memory_space=pltpu.MemorySpace.VMEM)

    # TODO(synk): large shapes -> bf16 out_shape (HBM-bandwidth-bound regime on
    #             v5e/v6e); kept f32 here for direct comparison vs. reference.
    out_flat = pl.pallas_call(
        _resblock_kernel,
        out_shape=jax.ShapeDtypeStruct((N * H, WC), jnp.float32),
        in_specs=[vmem] * 6,
        out_specs=vmem,
    )(x_flat, w1, w2, gb, rep, rep_t)
    return out_flat.reshape(N, H, W, C)


def resblock1_nchw(x_nchw, params):
    # PyTorch-convention adapter.  Keeping the model NHWC end-to-end avoids
    # these two boundary transposes entirely (resblock1_nhwc is the preferred
    # entry point); they exist only to expose the NCHW nn.Module interface.
    x_nhwc = jnp.transpose(x_nchw, (0, 2, 3, 1))
    out = resblock1_nhwc(x_nhwc, params)
    return jnp.transpose(out, (0, 3, 1, 2))


# ------------------------------ parameter init --------------------------------
def init_params(key, channels):
    k1, k2, k3, k4, k5, k6 = jax.random.split(key, 6)
    return {
        "w1": 0.1 * jax.random.normal(k1, (channels, channels, 3, 3), jnp.float32),
        "g1": 1.0 + 0.1 * jax.random.normal(k2, (channels,), jnp.float32),
        "b1": 0.1 * jax.random.normal(k3, (channels,), jnp.float32),
        "w2": 0.1 * jax.random.normal(k4, (channels, channels, 3, 3), jnp.float32),
        "g2": 1.0 + 0.1 * jax.random.normal(k5, (channels,), jnp.float32),
        "b2": 0.1 * jax.random.normal(k6, (channels,), jnp.float32),
    }


# ------------------------------ pure-JAX reference ----------------------------
def _bn_train_ref(x, gamma, beta):
    mean = jnp.mean(x, axis=(0, 2, 3), keepdims=True)
    var = jnp.mean((x - mean) ** 2, axis=(0, 2, 3), keepdims=True)
    g = gamma.reshape(1, -1, 1, 1)
    b = beta.reshape(1, -1, 1, 1)
    return (x - mean) * lax.rsqrt(var + EPS) * g + b


def resblock1_ref(x_nchw, params):
    conv = lambda x, w: lax.conv_general_dilated(
        x, w, (1, 1), ((1, 1), (1, 1)),
        dimension_numbers=("NCHW", "OIHW", "NCHW"),
        precision=lax.Precision.HIGHEST)
    out = jnp.maximum(_bn_train_ref(conv(x_nchw, params["w1"]),
                                    params["g1"], params["b1"]), 0.0)
    out = _bn_train_ref(conv(out, params["w2"]), params["g2"], params["b2"])
    return jnp.maximum(out + x_nchw, 0.0)


# ------------------------------------ main -------------------------------------
if __name__ == "__main__":
    key = jax.random.PRNGKey(0)
    kx, kp = jax.random.split(key)

    # W * C = 128 -> the kernel's working layout is exactly one vreg wide.
    N, C, H, W = 2, 8, 16, 16
    x = jax.random.normal(kx, (N, C, H, W), jnp.float32)
    params = init_params(kp, C)

    run = jax.jit(resblock1_nchw)
    out = jax.block_until_ready(run(x, params))
    ref = jax.block_until_ready(resblock1_ref(x, params))

    assert out.shape == (N, C, H, W)
    max_err = float(jnp.max(jnp.abs(out - ref)))
    # Tolerance re-derived for the bf16-operand MXU path vs. the f32 XLA conv
    # reference: BN keeps activations O(1), so expected max deviation from
    # bf16 input rounding is ~1e-2; structural bugs produce O(0.3+) errors,
    # so 5e-2 still separates correct from broken cleanly.
    assert max_err < 5e-2, f"max_err={max_err}"

    print("KERNEL_OK")
</pallas_src>

<mosaic_0001>
module attributes {stable_mosaic.version = 11 : i64} {
  func.func @_resblock_kernel(%arg0: memref<2x16x128xf32, #tpu.memory_space<vmem>>, %arg1: memref<384x128xbf16, #tpu.memory_space<vmem>>, %arg2: memref<384x128xbf16, #tpu.memory_space<vmem>>, %arg3: memref<4x8xf32, #tpu.memory_space<vmem>>, %arg4: memref<8x128xf32, #tpu.memory_space<vmem>>, %arg5: memref<128x8xf32, #tpu.memory_space<vmem>>, %arg6: memref<32x128xf32, #tpu.memory_space<vmem>>) attributes {dimension_semantics = [], scalar_prefetch = 0 : i64, scratch_operands = 0 : i64, tpu.core_type = #tpu.core_type<tc>} {
    %c0 = arith.constant 0 : index
    %c0_0 = arith.constant 0 : index
    %c0_1 = arith.constant 0 : index
    %0 = vector.load %arg0[%c0, %c0_0, %c0_1] : memref<2x16x128xf32, #tpu.memory_space<vmem>>, vector<2x16x128xf32>
    %c0_2 = arith.constant 0 : index
    %c0_3 = arith.constant 0 : index
    %1 = vector.load %arg3[%c0_2, %c0_3] : memref<4x8xf32, #tpu.memory_space<vmem>>, vector<1x8xf32>
    %c1 = arith.constant 1 : index
    %c0_4 = arith.constant 0 : index
    %2 = vector.load %arg3[%c1, %c0_4] : memref<4x8xf32, #tpu.memory_space<vmem>>, vector<1x8xf32>
    %c2 = arith.constant 2 : index
    %c0_5 = arith.constant 0 : index
    %3 = vector.load %arg3[%c2, %c0_5] : memref<4x8xf32, #tpu.memory_space<vmem>>, vector<1x8xf32>
    %c3 = arith.constant 3 : index
    %c0_6 = arith.constant 0 : index
    %4 = vector.load %arg3[%c3, %c0_6] : memref<4x8xf32, #tpu.memory_space<vmem>>, vector<1x8xf32>
    %cst = arith.constant 0.000000e+00 : f32
    %5 = vector.broadcast %cst : f32 to vector<2x1x128xf32>
    %6 = vector.extract_strided_slice %0 {offsets = [0, 0, 0], sizes = [2, 15, 128], strides = [1, 1, 1]} : vector<2x16x128xf32> to vector<2x15x128xf32>
    %7 = tpu.concatenate %5, %6 in 1 : vector<2x1x128xf32>, vector<2x15x128xf32> -> vector<2x16x128xf32>
    %8 = vector.extract_strided_slice %0 {offsets = [0, 1, 0], sizes = [2, 15, 128], strides = [1, 1, 1]} : vector<2x16x128xf32> to vector<2x15x128xf32>
    %9 = tpu.concatenate %8, %5 in 1 : vector<2x15x128xf32>, vector<2x1x128xf32> -> vector<2x16x128xf32>
    %10 = tpu.concatenate %7, %0, %9 in 2 : vector<2x16x128xf32>, vector<2x16x128xf32>, vector<2x16x128xf32> -> vector<2x16x384xf32>
    %11 = vector.shape_cast %10 : vector<2x16x384xf32> to vector<32x384xf32>
    %12 = arith.truncf %11 : vector<32x384xf32> to vector<32x384xbf16>
    %c0_7 = arith.constant 0 : index
    %c0_8 = arith.constant 0 : index
    %13 = vector.load %arg1[%c0_7, %c0_8] : memref<384x128xbf16, #tpu.memory_space<vmem>>, vector<384x128xbf16>
    %cst_9 = arith.constant dense<0.000000e+00> : vector<32x128xf32>
    %14 = tpu.matmul %12, %13, %cst_9 {dimension_numbers = #tpu.dot_dimension_numbers<[1], [0], [0], [1], [0, 0, 1, 1], [], []>} : vector<32x384xbf16>, vector<384x128xbf16>, vector<32x128xf32> -> vector<32x128xf32>
    %cst_10 = arith.constant dense<0.000000e+00> : vector<128xf32>
    %15 = vector.multi_reduction <add>, %14, %cst_10 [0] : vector<32x128xf32> to vector<128xf32>
    %16 = vector.shape_cast %15 : vector<128xf32> to vector<1x128xf32>
    %17 = arith.mulf %14, %14 : vector<32x128xf32>
    %cst_11 = arith.constant dense<0.000000e+00> : vector<128xf32>
    %18 = vector.multi_reduction <add>, %17, %cst_11 [0] : vector<32x128xf32> to vector<128xf32>
    %19 = vector.shape_cast %18 : vector<128xf32> to vector<1x128xf32>
    %20 = tpu.concatenate %16, %19 in 0 : vector<1x128xf32>, vector<1x128xf32> -> vector<2x128xf32>
    %c0_12 = arith.constant 0 : index
    %c0_13 = arith.constant 0 : index
    %21 = vector.load %arg5[%c0_12, %c0_13] : memref<128x8xf32, #tpu.memory_space<vmem>>, vector<128x8xf32>
    %cst_14 = arith.constant dense<0.000000e+00> : vector<2x8xf32>
    %22 = tpu.matmul %20, %21, %cst_14 {dimension_numbers = #tpu.dot_dimension_numbers<[1], [0], [0], [1], [0, 0, 1, 1], [], []>} : vector<2x128xf32>, vector<128x8xf32>, vector<2x8xf32> -> vector<2x8xf32>
    %23 = vector.extract_strided_slice %22 {offsets = [0, 0], sizes = [1, 8], strides = [1, 1]} : vector<2x8xf32> to vector<1x8xf32>
    %cst_15 = arith.constant 0.001953125 : f32
    %24 = vector.broadcast %cst_15 : f32 to vector<1x8xf32>
    %25 = arith.mulf %23, %24 : vector<1x8xf32>
    %26 = vector.extract_strided_slice %22 {offsets = [1, 0], sizes = [1, 8], strides = [1, 1]} : vector<2x8xf32> to vector<1x8xf32>
    %cst_16 = arith.constant 0.001953125 : f32
    %27 = vector.broadcast %cst_16 : f32 to vector<1x8xf32>
    %28 = arith.mulf %26, %27 : vector<1x8xf32>
    %29 = arith.mulf %25, %25 : vector<1x8xf32>
    %30 = arith.subf %28, %29 : vector<1x8xf32>
    %cst_17 = arith.constant 9.99999974E-6 : f32
    %31 = vector.broadcast %cst_17 : f32 to vector<1x8xf32>
    %32 = arith.addf %30, %31 : vector<1x8xf32>
    %33 = math.rsqrt %32 : vector<1x8xf32>
    %34 = arith.mulf %1, %33 : vector<1x8xf32>
    %35 = arith.mulf %25, %34 : vector<1x8xf32>
    %36 = arith.subf %2, %35 : vector<1x8xf32>
    %37 = tpu.concatenate %34, %36 in 0 : vector<1x8xf32>, vector<1x8xf32> -> vector<2x8xf32>
    %c0_18 = arith.constant 0 : index
    %c0_19 = arith.constant 0 : index
    %38 = vector.load %arg4[%c0_18, %c0_19] : memref<8x128xf32, #tpu.memory_space<vmem>>, vector<8x128xf32>
    %cst_20 = arith.constant dense<0.000000e+00> : vector<2x128xf32>
    %39 = tpu.matmul %37, %38, %cst_20 {dimension_numbers = #tpu.dot_dimension_numbers<[1], [0], [0], [1], [0, 0, 1, 1], [], []>} : vector<2x8xf32>, vector<8x128xf32>, vector<2x128xf32> -> vector<2x128xf32>
    %40 = vector.extract_strided_slice %39 {offsets = [0, 0], sizes = [1, 128], strides = [1, 1]} : vector<2x128xf32> to vector<1x128xf32>
    %41 = vector.broadcast %40 : vector<1x128xf32> to vector<32x128xf32>
    %42 = arith.mulf %14, %41 : vector<32x128xf32>
    %43 = vector.extract_strided_slice %39 {offsets = [1, 0], sizes = [1, 128], strides = [1, 1]} : vector<2x128xf32> to vector<1x128xf32>
    %44 = vector.broadcast %43 : vector<1x128xf32> to vector<32x128xf32>
    %45 = arith.addf %42, %44 : vector<32x128xf32>
    %cst_21 = arith.constant 0.000000e+00 : f32
    %46 = vector.broadcast %cst_21 : f32 to vector<32x128xf32>
    %47 = arith.maximumf %45, %46 : vector<32x128xf32>
    %48 = vector.shape_cast %47 : vector<32x128xf32> to vector<2x16x128xf32>
    %cst_22 = arith.constant 0.000000e+00 : f32
    %49 = vector.broadcast %cst_22 : f32 to vector<2x1x128xf32>
    %50 = vector.extract_strided_slice %48 {offsets = [0, 0, 0], sizes = [2, 15, 128], strides = [1, 1, 1]} : vector<2x16x128xf32> to vector<2x15x128xf32>
    %51 = tpu.concatenate %49, %50 in 1 : vector<2x1x128xf32>, vector<2x15x128xf32> -> vector<2x16x128xf32>
    %52 = vector.extract_strided_slice %48 {offsets = [0, 1, 0], sizes = [2, 15, 128], strides = [1, 1, 1]} : vector<2x16x128xf32> to vector<2x15x128xf32>
    %53 = tpu.concatenate %52, %49 in 1 : vector<2x15x128xf32>, vector<2x1x128xf32> -> vector<2x16x128xf32>
    %54 = tpu.concatenate %51, %48, %53 in 2 : vector<2x16x128xf32>, vector<2x16x128xf32>, vector<2x16x128xf32> -> vector<2x16x384xf32>
    %55 = vector.shape_cast %54 : vector<2x16x384xf32> to vector<32x384xf32>
    %56 = arith.truncf %55 : vector<32x384xf32> to vector<32x384xbf16>
    %c0_23 = arith.constant 0 : index
    %c0_24 = arith.constant 0 : index
    %57 = vector.load %arg2[%c0_23, %c0_24] : memref<384x128xbf16, #tpu.memory_space<vmem>>, vector<384x128xbf16>
    %cst_25 = arith.constant dense<0.000000e+00> : vector<32x128xf32>
    %58 = tpu.matmul %56, %57, %cst_25 {dimension_numbers = #tpu.dot_dimension_numbers<[1], [0], [0], [1], [0, 0, 1, 1], [], []>} : vector<32x384xbf16>, vector<384x128xbf16>, vector<32x128xf32> -> vector<32x128xf32>
    %cst_26 = arith.constant dense<0.000000e+00> : vector<128xf32>
    %59 = vector.multi_reduction <add>, %58, %cst_26 [0] : vector<32x128xf32> to vector<128xf32>
    %60 = vector.shape_cast %59 : vector<128xf32> to vector<1x128xf32>
    %61 = arith.mulf %58, %58 : vector<32x128xf32>
    %cst_27 = arith.constant dense<0.000000e+00> : vector<128xf32>
    %62 = vector.multi_reduction <add>, %61, %cst_27 [0] : vector<32x128xf32> to vector<128xf32>
    %63 = vector.shape_cast %62 : vector<128xf32> to vector<1x128xf32>
    %64 = tpu.concatenate %60, %63 in 0 : vector<1x128xf32>, vector<1x128xf32> -> vector<2x128xf32>
    %c0_28 = arith.constant 0 : index
    %c0_29 = arith.constant 0 : index
    %65 = vector.load %arg5[%c0_28, %c0_29] : memref<128x8xf32, #tpu.memory_space<vmem>>, vector<128x8xf32>
    %cst_30 = arith.constant dense<0.000000e+00> : vector<2x8xf32>
    %66 = tpu.matmul %64, %65, %cst_30 {dimension_numbers = #tpu.dot_dimension_numbers<[1], [0], [0], [1], [0, 0, 1, 1], [], []>} : vector<2x128xf32>, vector<128x8xf32>, vector<2x8xf32> -> vector<2x8xf32>
    %67 = vector.extract_strided_slice %66 {offsets = [0, 0], sizes = [1, 8], strides = [1, 1]} : vector<2x8xf32> to vector<1x8xf32>
    %cst_31 = arith.constant 0.001953125 : f32
    %68 = vector.broadcast %cst_31 : f32 to vector<1x8xf32>
    %69 = arith.mulf %67, %68 : vector<1x8xf32>
    %70 = vector.extract_strided_slice %66 {offsets = [1, 0], sizes = [1, 8], strides = [1, 1]} : vector<2x8xf32> to vector<1x8xf32>
    %cst_32 = arith.constant 0.001953125 : f32
    %71 = vector.broadcast %cst_32 : f32 to vector<1x8xf32>
    %72 = arith.mulf %70, %71 : vector<1x8xf32>
    %73 = arith.mulf %69, %69 : vector<1x8xf32>
    %74 = arith.subf %72, %73 : vector<1x8xf32>
    %cst_33 = arith.constant 9.99999974E-6 : f32
    %75 = vector.broadcast %cst_33 : f32 to vector<1x8xf32>
    %76 = arith.addf %74, %75 : vector<1x8xf32>
    %77 = math.rsqrt %76 : vector<1x8xf32>
    %78 = arith.mulf %3, %77 : vector<1x8xf32>
    %79 = arith.mulf %69, %78 : vector<1x8xf32>
    %80 = arith.subf %4, %79 : vector<1x8xf32>
    %81 = tpu.concatenate %78, %80 in 0 : vector<1x8xf32>, vector<1x8xf32> -> vector<2x8xf32>
    %c0_34 = arith.constant 0 : index
    %c0_35 = arith.constant 0 : index
    %82 = vector.load %arg4[%c0_34, %c0_35] : memref<8x128xf32, #tpu.memory_space<vmem>>, vector<8x128xf32>
    %cst_36 = arith.constant dense<0.000000e+00> : vector<2x128xf32>
    %83 = tpu.matmul %81, %82, %cst_36 {dimension_numbers = #tpu.dot_dimension_numbers<[1], [0], [0], [1], [0, 0, 1, 1], [], []>} : vector<2x8xf32>, vector<8x128xf32>, vector<2x128xf32> -> vector<2x128xf32>
    %84 = vector.extract_strided_slice %83 {offsets = [0, 0], sizes = [1, 128], strides = [1, 1]} : vector<2x128xf32> to vector<1x128xf32>
    %85 = vector.broadcast %84 : vector<1x128xf32> to vector<32x128xf32>
    %86 = arith.mulf %58, %85 : vector<32x128xf32>
    %87 = vector.extract_strided_slice %83 {offsets = [1, 0], sizes = [1, 128], strides = [1, 1]} : vector<2x128xf32> to vector<1x128xf32>
    %88 = vector.broadcast %87 : vector<1x128xf32> to vector<32x128xf32>
    %89 = arith.addf %86, %88 : vector<32x128xf32>
    %90 = vector.shape_cast %0 : vector<2x16x128xf32> to vector<32x128xf32>
    %91 = arith.addf %89, %90 : vector<32x128xf32>
    %cst_37 = arith.constant 0.000000e+00 : f32
    %92 = vector.broadcast %cst_37 : f32 to vector<32x128xf32>
    %93 = arith.maximumf %91, %92 : vector<32x128xf32>
    %c0_38 = arith.constant 0 : index
    %c0_39 = arith.constant 0 : index
    %94 = vector.load %arg6[%c0_38, %c0_39] : memref<32x128xf32, #tpu.memory_space<vmem>>, vector<32x128xf32>
    tpu.vector_store %arg6[%c0_38, %c0_39], %93 {strides = array<i32>} : memref<32x128xf32, #tpu.memory_space<vmem>>, vector<32x128xf32>,
    return
  }
}

</mosaic_0001>

<llo_original>
// kernel: resblock1_nchw.1
$region0: #{resblock1_nchw.1}
  #allocation0 [shape = 'u32[]', space=smem, size = 0x4, offset = 0x4, fixed_abs, tag = 'smem constant byte address 0x4 - core index']
  #allocation1 [shape = 'u32[144,128]{1,0:T(1,128)}', space=vmem, size = 0x12000, scoped, tag = 'internal scratch']
  %s0 = inlined_call_operand.vmem [shape: f32[2,16,128], index: 0, kind: input, shape index: {}]
  %s1 = inlined_call_operand.vmem [shape: bf16[384,128], index: 1, kind: input, shape index: {}]
  %s2 = inlined_call_operand.vmem [shape: bf16[384,128], index: 2, kind: input, shape index: {}]
  %s3 = inlined_call_operand.vmem [shape: f32[4,8], index: 3, kind: input, shape index: {}]
  %s4 = inlined_call_operand.vmem [shape: f32[8,128], index: 4, kind: input, shape index: {}]
  %s5 = inlined_call_operand.vmem [shape: f32[128,8], index: 5, kind: input, shape index: {}]
  %s6 = inlined_call_operand.vmem [shape: f32[32,128], index: 6, kind: output, shape index: {}]
  %s7 = sld [smem:[#allocation0]]
  $region34: #{resblock1_nchw.1} parent=0
    _
  %s9 = ssub.s32 1, %s7
  %s10 = scalar_select 0, %s9, %s7
  // Predicated region
  $region2: #{resblock1_nchw.1} parent=0 // pred_check
    _
  $region3: #{resblock1_nchw.1} parent=0 // pred_check_branch
    %12 = sbr.rel (0) target = $region5
  $region4: #{resblock1_nchw.1} parent=0 // pred_region
    _
  $region5: #{resblock1_nchw.1} parent=0 // pred_fallthru
    _
  // Predicated region
  $region6: #{resblock1_nchw.1} parent=0 // pred_check
    _
  $region7: #{resblock1_nchw.1} parent=0 // pred_check_branch
    %14 = sbr.rel (0) target = $region9
  $region8: #{resblock1_nchw.1} parent=0 // pred_region
    _
  $region9: #{resblock1_nchw.1} parent=0 // pred_fallthru
    _
  // Predicated region
  $region10: #{resblock1_nchw.1} parent=0 // pred_check
    _
  $region11: #{resblock1_nchw.1} parent=0 // pred_check_branch
    %16 = sbr.rel (0) target = $region13
  $region12: #{resblock1_nchw.1} parent=0 // pred_region
    _
  $region13: #{resblock1_nchw.1} parent=0 // pred_fallthru
    _
  // Predicated region
  $region14: #{resblock1_nchw.1} parent=0 // pred_check
    _
  $region15: #{resblock1_nchw.1} parent=0 // pred_check_branch
    %18 = sbr.rel (0) target = $region17
  $region16: #{resblock1_nchw.1} parent=0 // pred_region
    _
  $region17: #{resblock1_nchw.1} parent=0 // pred_fallthru
    _
  // Predicated region
  $region18: #{resblock1_nchw.1} parent=0 // pred_check
    _
  $region19: #{resblock1_nchw.1} parent=0 // pred_check_branch
    %20 = sbr.rel (0) target = $region21
  $region20: #{resblock1_nchw.1} parent=0 // pred_region
    _
  $region21: #{resblock1_nchw.1} parent=0 // pred_fallthru
    _
  // Predicated region
  $region22: #{resblock1_nchw.1} parent=0 // pred_check
    _
  $region23: #{resblock1_nchw.1} parent=0 // pred_check_branch
    %22 = sbr.rel (0) target = $region25
  $region24: #{resblock1_nchw.1} parent=0 // pred_region
    _
  $region25: #{resblock1_nchw.1} parent=0 // pred_fallthru
    _
  %v24 = vld [vmem:[%s0] sm:$0xff]
  %v25 = vld [vmem:[%s0 + $0x8] sm:$0xff]
  %v26 = vld [vmem:[%s0 + $0x10] sm:$0xff]
  %v27 = vld [vmem:[%s0 + $0x18] sm:$0xff]
  %v28 = vld [vmem:[%s3] sm:$0x1]
  %v29 = vld [vmem:[%s3 + $0x1] sm:$0x1]
  %v30 = vld [vmem:[%s3 + $0x2] sm:$0x1]
  %v31 = vld [vmem:[%s3 + $0x3] sm:$0x1]
  %vm36 = vcmask 1040384
  %v37 = vrot.slane %v24, 7
  %v38 = vrot.slane %v25, 7
  %v39 = vsel %vm36, %v37, %v38
  %v40 = vrot.slane %v26, 7
  %v41 = vrot.slane %v27, 7
  %v42 = vsel %vm36, %v40, %v41
  %v47 = vsel %vm36, 0.0, %v37
  %v48 = vsel %vm36, 0.0, %v40
  %vm49 = vcmask 1046528
  %v50 = vrot.slane %v24, 1
  %v51 = vrot.slane %v25, 1
  %v52 = vsel %vm49, %v50, %v51
  %v53 = vrot.slane %v26, 1
  %v54 = vrot.slane %v27, 1
  %v55 = vsel %vm49, %v53, %v54
  %v60 = vsel %vm49, %v51, 0.0
  %v61 = vsel %vm49, %v54, 0.0
  %v62 = vpack.c.bf16 %v39, %v47
  %v63 = vpack.c.bf16 %v25, %v24
  %v64 = vpack.c.bf16 %v60, %v52
  %v65 = vpack.c.bf16 %v42, %v48
  %v66 = vpack.c.bf16 %v27, %v26
  %v67 = vpack.c.bf16 %v61, %v55
  %v68 = vld [vmem:[%s1] sm:$0xf]
  %v69 = vld [vmem:[%s1 + $0x4] sm:$0xf]
  %v70 = vld [vmem:[%s1 + $0x8] sm:$0xf]
  %v71 = vld [vmem:[%s1 + $0xc] sm:$0xf]
  %v72 = vld [vmem:[%s1 + $0x10] sm:$0xf]
  %v73 = vld [vmem:[%s1 + $0x14] sm:$0xf]
  %v74 = vld [vmem:[%s1 + $0x18] sm:$0xf]
  %v75 = vld [vmem:[%s1 + $0x1c] sm:$0xf]
  %v76 = vld [vmem:[%s1 + $0x20] sm:$0xf]
  %v77 = vld [vmem:[%s1 + $0x24] sm:$0xf]
  %v78 = vld [vmem:[%s1 + $0x28] sm:$0xf]
  %v79 = vld [vmem:[%s1 + $0x2c] sm:$0xf]
  %v80 = vld [vmem:[%s1 + $0x30] sm:$0xf]
  %v81 = vld [vmem:[%s1 + $0x34] sm:$0xf]
  %v82 = vld [vmem:[%s1 + $0x38] sm:$0xf]
  %v83 = vld [vmem:[%s1 + $0x3c] sm:$0xf]
  %v84 = vld [vmem:[%s1 + $0x40] sm:$0xf]
  %v85 = vld [vmem:[%s1 + $0x44] sm:$0xf]
  %v86 = vld [vmem:[%s1 + $0x48] sm:$0xf]
  %v87 = vld [vmem:[%s1 + $0x4c] sm:$0xf]
  %v88 = vld [vmem:[%s1 + $0x50] sm:$0xf]
  %v89 = vld [vmem:[%s1 + $0x54] sm:$0xf]
  %v90 = vld [vmem:[%s1 + $0x58] sm:$0xf]
  %v91 = vld [vmem:[%s1 + $0x5c] sm:$0xf]
  %v92 = vld [vmem:[%s1 + $0x60] sm:$0xf]
  %v93 = vld [vmem:[%s1 + $0x64] sm:$0xf]
  %v94 = vld [vmem:[%s1 + $0x68] sm:$0xf]
  %v95 = vld [vmem:[%s1 + $0x6c] sm:$0xf]
  %v96 = vld [vmem:[%s1 + $0x70] sm:$0xf]
  %v97 = vld [vmem:[%s1 + $0x74] sm:$0xf]
  %v98 = vld [vmem:[%s1 + $0x78] sm:$0xf]
  %v99 = vld [vmem:[%s1 + $0x7c] sm:$0xf]
  %v100 = vld [vmem:[%s1 + $0x80] sm:$0xf]
  %v101 = vld [vmem:[%s1 + $0x84] sm:$0xf]
  %v102 = vld [vmem:[%s1 + $0x88] sm:$0xf]
  %v103 = vld [vmem:[%s1 + $0x8c] sm:$0xf]
  %v104 = vld [vmem:[%s1 + $0x90] sm:$0xf]
  %v105 = vld [vmem:[%s1 + $0x94] sm:$0xf]
  %v106 = vld [vmem:[%s1 + $0x98] sm:$0xf]
  %v107 = vld [vmem:[%s1 + $0x9c] sm:$0xf]
  %v108 = vld [vmem:[%s1 + $0xa0] sm:$0xf]
  %v109 = vld [vmem:[%s1 + $0xa4] sm:$0xf]
  %v110 = vld [vmem:[%s1 + $0xa8] sm:$0xf]
  %v111 = vld [vmem:[%s1 + $0xac] sm:$0xf]
  %v112 = vld [vmem:[%s1 + $0xb0] sm:$0xf]
  %v113 = vld [vmem:[%s1 + $0xb4] sm:$0xf]
  %v114 = vld [vmem:[%s1 + $0xb8] sm:$0xf]
  %v115 = vld [vmem:[%s1 + $0xbc] sm:$0xf]
  %v164 = vunpack.c.l.b16 %v68
  %v165 = vunpack.c.l.b16 %v69
  %v166 = vunpack.c.l.b16 %v70
  %v167 = vunpack.c.l.b16 %v71
  %v168 = vunpack.c.l.b16 %v72
  %v169 = vunpack.c.l.b16 %v73
  %v170 = vunpack.c.l.b16 %v74
  %v171 = vunpack.c.l.b16 %v75
  %v172 = vunpack.c.l.b16 %v76
  %v173 = vunpack.c.l.b16 %v77
  %v174 = vunpack.c.l.b16 %v78
  %v175 = vunpack.c.l.b16 %v79
  %v176 = vunpack.c.l.b16 %v80
  %v177 = vunpack.c.l.b16 %v81
  %v178 = vunpack.c.l.b16 %v82
  %v179 = vunpack.c.l.b16 %v83
  %v180 = vunpack.c.l.b16 %v84
  %v181 = vunpack.c.l.b16 %v85
  %v182 = vunpack.c.l.b16 %v86
  %v183 = vunpack.c.l.b16 %v87
  %v184 = vunpack.c.l.b16 %v88
  %v185 = vunpack.c.l.b16 %v89
  %v186 = vunpack.c.l.b16 %v90
  %v187 = vunpack.c.l.b16 %v91
  %v188 = vunpack.c.l.b16 %v92
  %v189 = vunpack.c.l.b16 %v93
  %v190 = vunpack.c.l.b16 %v94
  %v191 = vunpack.c.l.b16 %v95
  %v192 = vunpack.c.l.b16 %v96
  %v193 = vunpack.c.l.b16 %v97
  %v194 = vunpack.c.l.b16 %v98
  %v195 = vunpack.c.l.b16 %v99
  %v196 = vunpack.c.l.b16 %v100
  %v197 = vunpack.c.l.b16 %v101
  %v198 = vunpack.c.l.b16 %v102
  %v199 = vunpack.c.l.b16 %v103
  %v200 = vunpack.c.l.b16 %v104
  %v201 = vunpack.c.l.b16 %v105
  %v202 = vunpack.c.l.b16 %v106
  %v203 = vunpack.c.l.b16 %v107
  %v204 = vunpack.c.l.b16 %v108
  %v205 = vunpack.c.l.b16 %v109
  %v206 = vunpack.c.l.b16 %v110
  %v207 = vunpack.c.l.b16 %v111
  %v208 = vunpack.c.l.b16 %v112
  %v209 = vunpack.c.l.b16 %v113
  %v210 = vunpack.c.l.b16 %v114
  %v211 = vunpack.c.l.b16 %v115
  %v212 = vpack.c.b16 %v165, %v164
  %v213 = vpack.c.b16 %v167, %v166
  %v214 = vpack.c.b16 %v169, %v168
  %v215 = vpack.c.b16 %v171, %v170
  %v216 = vpack.c.b16 %v173, %v172
  %v217 = vpack.c.b16 %v175, %v174
  %v218 = vpack.c.b16 %v177, %v176
  %v219 = vpack.c.b16 %v179, %v178
  %v220 = vpack.c.b16 %v181, %v180
  %v221 = vpack.c.b16 %v183, %v182
  %v222 = vpack.c.b16 %v185, %v184
  %v223 = vpack.c.b16 %v187, %v186
  %v224 = vpack.c.b16 %v189, %v188
  %v225 = vpack.c.b16 %v191, %v190
  %v226 = vpack.c.b16 %v193, %v192
  %v227 = vpack.c.b16 %v195, %v194
  %v228 = vpack.c.b16 %v197, %v196
  %v229 = vpack.c.b16 %v199, %v198
  %v230 = vpack.c.b16 %v201, %v200
  %v231 = vpack.c.b16 %v203, %v202
  %v232 = vpack.c.b16 %v205, %v204
  %v233 = vpack.c.b16 %v207, %v206
  %v234 = vpack.c.b16 %v209, %v208
  %v235 = vpack.c.b16 %v211, %v210
  %260 = vmatprep.subr.bf16.mxu0 0
  %261 = vmatpush1.bf16.msra.mxu0 %v219
  %262 = vmatprep.subr.bf16.mxu0 0
  %263 = vmatpush1.bf16.msra.mxu0 %v218
  %264 = vmatprep.subr.bf16.mxu0 0
  %265 = vmatpush1.bf16.msra.mxu0 %v217
  %266 = vmatprep.subr.bf16.mxu0 0
  %267 = vmatpush1.bf16.msra.mxu0 %v216
  %268 = vmatprep.subr.bf16.mxu0 0
  %269 = vmatpush1.bf16.msra.mxu0 %v215
  %270 = vmatprep.subr.bf16.mxu0 0
  %271 = vmatpush1.bf16.msra.mxu0 %v214
  %272 = vmatprep.subr.bf16.mxu0 0
  %273 = vmatpush1.bf16.msra.mxu0 %v213
  %274 = vmatprep.subr.bf16.mxu0 0
  %275 = vmatpush1.bf16.msra.mxu0 %v212
  %276 = vmatprep.subr.bf16.mxu0 0
  %277 = vmatpush2.bf16.msra.mxu0 %v227
  %278 = vmatprep.subr.bf16.mxu0 0
  %279 = vmatpush2.bf16.msra.mxu0 %v226
  %280 = vmatprep.subr.bf16.mxu0 0
  %281 = vmatpush2.bf16.msra.mxu0 %v225
  %282 = vmatprep.subr.bf16.mxu0 0
  %283 = vmatpush2.bf16.msra.mxu0 %v224
  %284 = vmatprep.subr.bf16.mxu0 0
  %285 = vmatpush2.bf16.msra.mxu0 %v223
  %286 = vmatprep.subr.bf16.mxu0 0
  %287 = vmatpush2.bf16.msra.mxu0 %v222
  %288 = vmatprep.subr.bf16.mxu0 0
  %289 = vmatpush2.bf16.msra.mxu0 %v221
  %290 = vmatprep.subr.bf16.mxu0 0
  %291 = vmatpush2.bf16.msra.mxu0 %v220
  %292 = vmatprep.mubr.bf16.mxu0 %v63
  %293 = vmatmul.mubr.bf16.gmra.mxu0 %v62
  %v294 = vpop.f32.mrf.mxu0
  %v295 = vadd.f32 0.0, %v294
  %v296 = vpop.f32.mrf.mxu0
  %v297 = vpop.f32.mrf.mxu0
  %v298 = vadd.f32 0.0, %v297
  %v299 = vpop.f32.mrf.mxu0
  %300 = vmatprep.mubr.bf16.mxu0 %v66
  %301 = vmatmul.mubr.bf16.gmra.mxu0 %v65
  %v302 = vpop.f32.mrf.mxu0
  %v303 = vadd.f32 0.0, %v302
  %v304 = vpop.f32.mrf.mxu0
  %v305 = vpop.f32.mrf.mxu0
  %v306 = vadd.f32 0.0, %v305
  %v307 = vpop.f32.mrf.mxu0
  %308 = vdwg.mxu0
  %309 = vmatprep.subr.bf16.mxu0 0
  %310 = vmatpush1.bf16.msra.mxu0 %v235
  %311 = vmatprep.subr.bf16.mxu0 0
  %312 = vmatpush1.bf16.msra.mxu0 %v234
  %313 = vmatprep.subr.bf16.mxu0 0
  %314 = vmatpush1.bf16.msra.mxu0 %v233
  %315 = vmatprep.subr.bf16.mxu0 0
  %316 = vmatpush1.bf16.msra.mxu0 %v232
  %317 = vmatprep.subr.bf16.mxu0 0
  %318 = vmatpush1.bf16.msra.mxu0 %v231
  %319 = vmatprep.subr.bf16.mxu0 0
  %320 = vmatpush1.bf16.msra.mxu0 %v230
  %321 = vmatprep.subr.bf16.mxu0 0
  %322 = vmatpush1.bf16.msra.mxu0 %v229
  %323 = vmatprep.subr.bf16.mxu0 0
  %324 = vmatpush1.bf16.msra.mxu0 %v228
  %325 = vmatprep.subr.bf16.mxu0 0
  %326 = vmatpush2.bf16.msra.mxu0 0
  %327 = vmatprep.subr.bf16.mxu0 0
  %328 = vmatpush2.bf16.msra.mxu0 0
  %329 = vmatprep.subr.bf16.mxu0 0
  %330 = vmatpush2.bf16.msra.mxu0 0
  %331 = vmatprep.subr.bf16.mxu0 0
  %332 = vmatpush2.bf16.msra.mxu0 0
  %333 = vmatprep.subr.bf16.mxu0 0
  %334 = vmatpush2.bf16.msra.mxu0 0
  %335 = vmatprep.subr.bf16.mxu0 0
  %336 = vmatpush2.bf16.msra.mxu0 0
  %337 = vmatprep.subr.bf16.mxu0 0
  %338 = vmatpush2.bf16.msra.mxu0 0
  %339 = vmatprep.subr.bf16.mxu0 0
  %340 = vmatpush2.bf16.msra.mxu0 0
  %341 = vmatprep.mubr.bf16.mxu0 0
  %342 = vmatmul.mubr.bf16.gmra.mxu0 %v64
  %v343 = vpop.f32.mrf.mxu0
  %v344 = vadd.f32 %v295, %v343
  %v345 = vpop.f32.mrf.mxu0
  %v346 = vpop.f32.mrf.mxu0
  %v347 = vadd.f32 %v298, %v346
  %v348 = vpop.f32.mrf.mxu0
  %349 = vmatprep.mubr.bf16.mxu0 0
  %350 = vmatmul.mubr.bf16.gmra.mxu0 %v67
  %v351 = vpop.f32.mrf.mxu0
  %v352 = vadd.f32 %v303, %v351
  %v353 = vpop.f32.mrf.mxu0
  %v354 = vpop.f32.mrf.mxu0
  %v355 = vadd.f32 %v306, %v354
  %v356 = vpop.f32.mrf.mxu0
  %357 = vdwg.mxu0
  %v358 = vadd.f32 %v344, %v347
  %v359 = vadd.f32 %v358, %v352
  %v360 = vadd.f32 %v359, %v355
  %v361 = vrot.slane %v360, 4
  %v362 = vadd.f32 %v360, %v361
  %v363 = vrot.slane %v362, 2
  %v364 = vadd.f32 %v362, %v363
  %v365 = vrot.slane %v364, 1
  %v366 = vadd.f32 %v364, %v365
  %v367 = vmul.f32 %v344, %v344
  %v368 = vmul.f32 %v347, %v347
  %v369 = vmul.f32 %v352, %v352
  %v370 = vmul.f32 %v355, %v355
  %v371 = vadd.f32 %v367, %v368
  %v372 = vadd.f32 %v371, %v369
  %v373 = vadd.f32 %v372, %v370
  %v374 = vrot.slane %v373, 4
  %v375 = vadd.f32 %v373, %v374
  %v376 = vrot.slane %v375, 2
  %v377 = vadd.f32 %v375, %v376
  %v378 = vrot.slane %v377, 1
  %v379 = vadd.f32 %v377, %v378
  %v380 = vsel %vm36, %v366, %v379
  %v381 = vld [vmem:[%s5] sm:$0xff]
  %v382 = vld [vmem:[%s5 + $0x8] sm:$0xff]
  %v383 = vld [vmem:[%s5 + $0x10] sm:$0xff]
  %v384 = vld [vmem:[%s5 + $0x18] sm:$0xff]
  %v385 = vld [vmem:[%s5 + $0x20] sm:$0xff]
  %v386 = vld [vmem:[%s5 + $0x28] sm:$0xff]
  %v387 = vld [vmem:[%s5 + $0x30] sm:$0xff]
  %v388 = vld [vmem:[%s5 + $0x38] sm:$0xff]
  %v389 = vld [vmem:[%s5 + $0x40] sm:$0xff]
  %v390 = vld [vmem:[%s5 + $0x48] sm:$0xff]
  %v391 = vld [vmem:[%s5 + $0x50] sm:$0xff]
  %v392 = vld [vmem:[%s5 + $0x58] sm:$0xff]
  %v393 = vld [vmem:[%s5 + $0x60] sm:$0xff]
  %v394 = vld [vmem:[%s5 + $0x68] sm:$0xff]
  %v395 = vld [vmem:[%s5 + $0x70] sm:$0xff]
  %v396 = vld [vmem:[%s5 + $0x78] sm:$0xff]
  %397 = vmatprep.subr.mxu0 0.0
  %398 = vmatpush1.msra.mxu0 %v396
  %399 = vmatprep.subr.mxu0 0.0
  %400 = vmatpush1.msra.mxu0 %v395
  %401 = vmatprep.subr.mxu0 0.0
  %402 = vmatpush1.msra.mxu0 %v394
  %403 = vmatprep.subr.mxu0 0.0
  %404 = vmatpush1.msra.mxu0 %v393
  %405 = vmatprep.subr.mxu0 0.0
  %406 = vmatpush1.msra.mxu0 %v392
  %407 = vmatprep.subr.mxu0 0.0
  %408 = vmatpush1.msra.mxu0 %v391
  %409 = vmatprep.subr.mxu0 0.0
  %410 = vmatpush1.msra.mxu0 %v390
  %411 = vmatprep.subr.mxu0 0.0
  %412 = vmatpush1.msra.mxu0 %v389
  %413 = vmatprep.subr.mxu0 0.0
  %414 = vmatpush1.msra.mxu0 %v388
  %415 = vmatprep.subr.mxu0 0.0
  %416 = vmatpush1.msra.mxu0 %v387
  %417 = vmatprep.subr.mxu0 0.0
  %418 = vmatpush1.msra.mxu0 %v386
  %419 = vmatprep.subr.mxu0 0.0
  %420 = vmatpush1.msra.mxu0 %v385
  %421 = vmatprep.subr.mxu0 0.0
  %422 = vmatpush1.msra.mxu0 %v384
  %423 = vmatprep.subr.mxu0 0.0
  %424 = vmatpush1.msra.mxu0 %v383
  %425 = vmatprep.subr.mxu0 0.0
  %426 = vmatpush1.msra.mxu0 %v382
  %427 = vmatprep.subr.mxu0 0.0
  %428 = vmatpush1.msra.mxu0 %v381
  %429 = vmatprep.subr.mxu0 0.0
  %430 = vmatpush2.msra.mxu0 0.0
  %431 = vmatprep.subr.mxu0 0.0
  %432 = vmatpush2.msra.mxu0 0.0
  %433 = vmatprep.subr.mxu0 0.0
  %434 = vmatpush2.msra.mxu0 0.0
  %435 = vmatprep.subr.mxu0 0.0
  %436 = vmatpush2.msra.mxu0 0.0
  %437 = vmatprep.subr.mxu0 0.0
  %438 = vmatpush2.msra.mxu0 0.0
  %439 = vmatprep.subr.mxu0 0.0
  %440 = vmatpush2.msra.mxu0 0.0
  %441 = vmatprep.subr.mxu0 0.0
  %442 = vmatpush2.msra.mxu0 0.0
  %443 = vmatprep.subr.mxu0 0.0
  %444 = vmatpush2.msra.mxu0 0.0
  %445 = vmatprep.subr.mxu0 0.0
  %446 = vmatpush2.msra.mxu0 0.0
  %447 = vmatprep.subr.mxu0 0.0
  %448 = vmatpush2.msra.mxu0 0.0
  %449 = vmatprep.subr.mxu0 0.0
  %450 = vmatpush2.msra.mxu0 0.0
  %451 = vmatprep.subr.mxu0 0.0
  %452 = vmatpush2.msra.mxu0 0.0
  %453 = vmatprep.subr.mxu0 0.0
  %454 = vmatpush2.msra.mxu0 0.0
  %455 = vmatprep.subr.mxu0 0.0
  %456 = vmatpush2.msra.mxu0 0.0
  %457 = vmatprep.subr.mxu0 0.0
  %458 = vmatpush2.msra.mxu0 0.0
  %459 = vmatprep.subr.mxu0 0.0
  %460 = vmatpush2.msra.mxu0 0.0
  %461 = vmatprep.mubr.f32.mxu0 0.0
  %462 = vmatmul.mubr.f32.gmra.mxu0 %v380
  %v463 = vpop.f32.mrf.mxu0
  %v464 = vadd.f32 0.0, %v463
  %v465 = vpop.f32.mrf.mxu0
  %466 = vdwg.mxu0
  %v467 = vmul.f32 %v464, 0.001953125
  %v468 = vmul.f32 %v467, %v467
  %v470 = vrot.slane %v468, 7
  %v472 = vsub.f32 %v467, %v470
  %v473 = vadd.f32 %v472, 1e-05
  %v474 = vrsqrt.pop %v473
  %v476 = vrot.slane %v474, 1
  %v478 = vmul.f32 %v28, %v476
  %v479 = vmul.f32 %v467, %v478
  %v480 = vsub.f32 %v29, %v479
  %v482 = vrot.slane %v480, 7
  %v484 = vsel %vm36, %v478, %v482
  %v485 = vld [vmem:[%s4] sm:$0xff]
  %vm486 = vcmask 64512
  %v488 = vsel %vm486, %v484, 0
  %490 = vmatprep.subr.mxu0 0.0
  %491 = vmatpush1.msra.mxu0 0.0
  %492 = vmatprep.subr.mxu0 0.0
  %493 = vmatpush1.msra.mxu0 0.0
  %494 = vmatprep.subr.mxu0 0.0
  %495 = vmatpush1.msra.mxu0 0.0
  %496 = vmatprep.subr.mxu0 0.0
  %497 = vmatpush1.msra.mxu0 0.0
  %498 = vmatprep.subr.mxu0 0.0
  %499 = vmatpush1.msra.mxu0 0.0
  %500 = vmatprep.subr.mxu0 0.0
  %501 = vmatpush1.msra.mxu0 0.0
  %502 = vmatprep.subr.mxu0 0.0
  %503 = vmatpush1.msra.mxu0 0.0
  %504 = vmatprep.subr.mxu0 0.0
  %505 = vmatpush1.msra.mxu0 0.0
  %506 = vmatprep.subr.mxu0 0.0
  %507 = vmatpush1.msra.mxu0 0.0
  %508 = vmatprep.subr.mxu0 0.0
  %509 = vmatpush1.msra.mxu0 0.0
  %510 = vmatprep.subr.mxu0 0.0
  %511 = vmatpush1.msra.mxu0 0.0
  %512 = vmatprep.subr.mxu0 0.0
  %513 = vmatpush1.msra.mxu0 0.0
  %514 = vmatprep.subr.mxu0 0.0
  %515 = vmatpush1.msra.mxu0 0.0
  %516 = vmatprep.subr.mxu0 0.0
  %517 = vmatpush1.msra.mxu0 0.0
  %518 = vmatprep.subr.mxu0 0.0
  %519 = vmatpush1.msra.mxu0 0.0
  %520 = vmatprep.subr.mxu0 0.0
  %521 = vmatpush1.msra.mxu0 %v485
  %522 = vmatprep.subr.mxu0 0.0
  %523 = vmatpush2.msra.mxu0 0.0
  %524 = vmatprep.subr.mxu0 0.0
  %525 = vmatpush2.msra.mxu0 0.0
  %526 = vmatprep.subr.mxu0 0.0
  %527 = vmatpush2.msra.mxu0 0.0
  %528 = vmatprep.subr.mxu0 0.0
  %529 = vmatpush2.msra.mxu0 0.0
  %530 = vmatprep.subr.mxu0 0.0
  %531 = vmatpush2.msra.mxu0 0.0
  %532 = vmatprep.subr.mxu0 0.0
  %533 = vmatpush2.msra.mxu0 0.0
  %534 = vmatprep.subr.mxu0 0.0
  %535 = vmatpush2.msra.mxu0 0.0
  %536 = vmatprep.subr.mxu0 0.0
  %537 = vmatpush2.msra.mxu0 0.0
  %538 = vmatprep.subr.mxu0 0.0
  %539 = vmatpush2.msra.mxu0 0.0
  %540 = vmatprep.subr.mxu0 0.0
  %541 = vmatpush2.msra.mxu0 0.0
  %542 = vmatprep.subr.mxu0 0.0
  %543 = vmatpush2.msra.mxu0 0.0
  %544 = vmatprep.subr.mxu0 0.0
  %545 = vmatpush2.msra.mxu0 0.0
  %546 = vmatprep.subr.mxu0 0.0
  %547 = vmatpush2.msra.mxu0 0.0
  %548 = vmatprep.subr.mxu0 0.0
  %549 = vmatpush2.msra.mxu0 0.0
  %550 = vmatprep.subr.mxu0 0.0
  %551 = vmatpush2.msra.mxu0 0.0
  %552 = vmatprep.subr.mxu0 0.0
  %553 = vmatpush2.msra.mxu0 0.0
  %554 = vmatprep.mubr.f32.mxu0 0.0
  %555 = vmatmul.mubr.f32.gmra.mxu0 %v488
  %v556 = vpop.f32.mrf.mxu0
  %v557 = vadd.f32 0.0, %v556
  %v558 = vpop.f32.mrf.mxu0
  %559 = vdwg.mxu0
  %v560 = vlaneseq
  %v561 = vshrl.u32 %v560, 7
  %v562 = vsub.s32 0, %v561
  %v563 = vrot.slane %v557, %v562
  %v564 = vmul.f32 %v344, %v563
  %v565 = vmul.f32 %v347, %v563
  %v566 = vmul.f32 %v352, %v563
  %v567 = vmul.f32 %v355, %v563
  %v568 = vlaneseq
  %v569 = vshrl.u32 %v568, 7
  %v570 = vsub.s32 1, %v569
  %v571 = vrot.slane %v557, %v570
  %v572 = vadd.f32 %v564, %v571
  %v573 = vadd.f32 %v565, %v571
  %v574 = vadd.f32 %v566, %v571
  %v575 = vadd.f32 %v567, %v571
  %v576 = vmax.f32 %v572, 0.0
  %v577 = vmax.f32 %v573, 0.0
  %v578 = vmax.f32 %v574, 0.0
  %v579 = vmax.f32 %v575, 0.0
  %v584 = vrot.slane %v576, 7
  %v585 = vrot.slane %v577, 7
  %v586 = vsel %vm36, %v584, %v585
  %v587 = vrot.slane %v578, 7
  %v588 = vrot.slane %v579, 7
  %v589 = vsel %vm36, %v587, %v588
  %v594 = vsel %vm36, 0.0, %v584
  %v595 = vsel %vm36, 0.0, %v587
  %v596 = vrot.slane %v576, 1
  %v597 = vrot.slane %v577, 1
  %v598 = vsel %vm49, %v596, %v597
  %v599 = vrot.slane %v578, 1
  %v600 = vrot.slane %v579, 1
  %v601 = vsel %vm49, %v599, %v600
  %v606 = vsel %vm49, %v597, 0.0
  %v607 = vsel %vm49, %v600, 0.0
  %v608 = vpack.c.bf16 %v586, %v594
  %v609 = vpack.c.bf16 %v577, %v576
  %v610 = vpack.c.bf16 %v606, %v598
  %v611 = vpack.c.bf16 %v589, %v595
  %v612 = vpack.c.bf16 %v579, %v578
  %v613 = vpack.c.bf16 %v607, %v601
  %v614 = vld [vmem:[%s2] sm:$0xf]
  %v615 = vld [vmem:[%s2 + $0x4] sm:$0xf]
  %v616 = vld [vmem:[%s2 + $0x8] sm:$0xf]
  %v617 = vld [vmem:[%s2 + $0xc] sm:$0xf]
  %v618 = vld [vmem:[%s2 + $0x10] sm:$0xf]
  %v619 = vld [vmem:[%s2 + $0x14] sm:$0xf]
  %v620 = vld [vmem:[%s2 + $0x18] sm:$0xf]
  %v621 = vld [vmem:[%s2 + $0x1c] sm:$0xf]
  %v622 = vld [vmem:[%s2 + $0x20] sm:$0xf]
  %v623 = vld [vmem:[%s2 + $0x24] sm:$0xf]
  %v624 = vld [vmem:[%s2 + $0x28] sm:$0xf]
  %v625 = vld [vmem:[%s2 + $0x2c] sm:$0xf]
  %v626 = vld [vmem:[%s2 + $0x30] sm:$0xf]
  %v627 = vld [vmem:[%s2 + $0x34] sm:$0xf]
  %v628 = vld [vmem:[%s2 + $0x38] sm:$0xf]
  %v629 = vld [vmem:[%s2 + $0x3c] sm:$0xf]
  %v630 = vld [vmem:[%s2 + $0x40] sm:$0xf]
  %v631 = vld [vmem:[%s2 + $0x44] sm:$0xf]
  %v632 = vld [vmem:[%s2 + $0x48] sm:$0xf]
  %v633 = vld [vmem:[%s2 + $0x4c] sm:$0xf]
  %v634 = vld [vmem:[%s2 + $0x50] sm:$0xf]
  %v635 = vld [vmem:[%s2 + $0x54] sm:$0xf]
  %v636 = vld [vmem:[%s2 + $0x58] sm:$0xf]
  %v637 = vld [vmem:[%s2 + $0x5c] sm:$0xf]
  %v638 = vld [vmem:[%s2 + $0x60] sm:$0xf]
  %v639 = vld [vmem:[%s2 + $0x64] sm:$0xf]
  %v640 = vld [vmem:[%s2 + $0x68] sm:$0xf]
  %v641 = vld [vmem:[%s2 + $0x6c] sm:$0xf]
  %v642 = vld [vmem:[%s2 + $0x70] sm:$0xf]
  %v643 = vld [vmem:[%s2 + $0x74] sm:$0xf]
  %v644 = vld [vmem:[%s2 + $0x78] sm:$0xf]
  %v645 = vld [vmem:[%s2 + $0x7c] sm:$0xf]
  %v646 = vld [vmem:[%s2 + $0x80] sm:$0xf]
  %v647 = vld [vmem:[%s2 + $0x84] sm:$0xf]
  %v648 = vld [vmem:[%s2 + $0x88] sm:$0xf]
  %v649 = vld [vmem:[%s2 + $0x8c] sm:$0xf]
  %v650 = vld [vmem:[%s2 + $0x90] sm:$0xf]
  %v651 = vld [vmem:[%s2 + $0x94] sm:$0xf]
  %v652 = vld [vmem:[%s2 + $0x98] sm:$0xf]
  %v653 = vld [vmem:[%s2 + $0x9c] sm:$0xf]
  %v654 = vld [vmem:[%s2 + $0xa0] sm:$0xf]
  %v655 = vld [vmem:[%s2 + $0xa4] sm:$0xf]
  %v656 = vld [vmem:[%s2 + $0xa8] sm:$0xf]
  %v657 = vld [vmem:[%s2 + $0xac] sm:$0xf]
  %v658 = vld [vmem:[%s2 + $0xb0] sm:$0xf]
  %v659 = vld [vmem:[%s2 + $0xb4] sm:$0xf]
  %v660 = vld [vmem:[%s2 + $0xb8] sm:$0xf]
  %v661 = vld [vmem:[%s2 + $0xbc] sm:$0xf]
  %v710 = vunpack.c.l.b16 %v614
  %v711 = vunpack.c.l.b16 %v615
  %v712 = vunpack.c.l.b16 %v616
  %v713 = vunpack.c.l.b16 %v617
  %v714 = vunpack.c.l.b16 %v618
  %v715 = vunpack.c.l.b16 %v619
  %v716 = vunpack.c.l.b16 %v620
  %v717 = vunpack.c.l.b16 %v621
  %v718 = vunpack.c.l.b16 %v622
  %v719 = vunpack.c.l.b16 %v623
  %v720 = vunpack.c.l.b16 %v624
  %v721 = vunpack.c.l.b16 %v625
  %v722 = vunpack.c.l.b16 %v626
  %v723 = vunpack.c.l.b16 %v627
  %v724 = vunpack.c.l.b16 %v628
  %v725 = vunpack.c.l.b16 %v629
  %v726 = vunpack.c.l.b16 %v630
  %v727 = vunpack.c.l.b16 %v631
  %v728 = vunpack.c.l.b16 %v632
  %v729 = vunpack.c.l.b16 %v633
  %v730 = vunpack.c.l.b16 %v634
  %v731 = vunpack.c.l.b16 %v635
  %v732 = vunpack.c.l.b16 %v636
  %v733 = vunpack.c.l.b16 %v637
  %v734 = vunpack.c.l.b16 %v638
  %v735 = vunpack.c.l.b16 %v639
  %v736 = vunpack.c.l.b16 %v640
  %v737 = vunpack.c.l.b16 %v641
  %v738 = vunpack.c.l.b16 %v642
  %v739 = vunpack.c.l.b16 %v643
  %v740 = vunpack.c.l.b16 %v644
  %v741 = vunpack.c.l.b16 %v645
  %v742 = vunpack.c.l.b16 %v646
  %v743 = vunpack.c.l.b16 %v647
  %v744 = vunpack.c.l.b16 %v648
  %v745 = vunpack.c.l.b16 %v649
  %v746 = vunpack.c.l.b16 %v650
  %v747 = vunpack.c.l.b16 %v651
  %v748 = vunpack.c.l.b16 %v652
  %v749 = vunpack.c.l.b16 %v653
  %v750 = vunpack.c.l.b16 %v654
  %v751 = vunpack.c.l.b16 %v655
  %v752 = vunpack.c.l.b16 %v656
  %v753 = vunpack.c.l.b16 %v657
  %v754 = vunpack.c.l.b16 %v658
  %v755 = vunpack.c.l.b16 %v659
  %v756 = vunpack.c.l.b16 %v660
  %v757 = vunpack.c.l.b16 %v661
  %v758 = vpack.c.b16 %v711, %v710
  %v759 = vpack.c.b16 %v713, %v712
  %v760 = vpack.c.b16 %v715, %v714
  %v761 = vpack.c.b16 %v717, %v716
  %v762 = vpack.c.b16 %v719, %v718
  %v763 = vpack.c.b16 %v721, %v720
  %v764 = vpack.c.b16 %v723, %v722
  %v765 = vpack.c.b16 %v725, %v724
  %v766 = vpack.c.b16 %v727, %v726
  %v767 = vpack.c.b16 %v729, %v728
  %v768 = vpack.c.b16 %v731, %v730
  %v769 = vpack.c.b16 %v733, %v732
  %v770 = vpack.c.b16 %v735, %v734
  %v771 = vpack.c.b16 %v737, %v736
  %v772 = vpack.c.b16 %v739, %v738
  %v773 = vpack.c.b16 %v741, %v740
  %v774 = vpack.c.b16 %v743, %v742
  %v775 = vpack.c.b16 %v745, %v744
  %v776 = vpack.c.b16 %v747, %v746
  %v777 = vpack.c.b16 %v749, %v748
  %v778 = vpack.c.b16 %v751, %v750
  %v779 = vpack.c.b16 %v753, %v752
  %v780 = vpack.c.b16 %v755, %v754
  %v781 = vpack.c.b16 %v757, %v756
  %806 = vmatprep.subr.bf16.mxu0 0
  %807 = vmatpush1.bf16.msra.mxu0 %v765
  %808 = vmatprep.subr.bf16.mxu0 0
  %809 = vmatpush1.bf16.msra.mxu0 %v764
  %810 = vmatprep.subr.bf16.mxu0 0
  %811 = vmatpush1.bf16.msra.mxu0 %v763
  %812 = vmatprep.subr.bf16.mxu0 0
  %813 = vmatpush1.bf16.msra.mxu0 %v762
  %814 = vmatprep.subr.bf16.mxu0 0
  %815 = vmatpush1.bf16.msra.mxu0 %v761
  %816 = vmatprep.subr.bf16.mxu0 0
  %817 = vmatpush1.bf16.msra.mxu0 %v760
  %818 = vmatprep.subr.bf16.mxu0 0
  %819 = vmatpush1.bf16.msra.mxu0 %v759
  %820 = vmatprep.subr.bf16.mxu0 0
  %821 = vmatpush1.bf16.msra.mxu0 %v758
  %822 = vmatprep.subr.bf16.mxu0 0
  %823 = vmatpush2.bf16.msra.mxu0 %v773
  %824 = vmatprep.subr.bf16.mxu0 0
  %825 = vmatpush2.bf16.msra.mxu0 %v772
  %826 = vmatprep.subr.bf16.mxu0 0
  %827 = vmatpush2.bf16.msra.mxu0 %v771
  %828 = vmatprep.subr.bf16.mxu0 0
  %829 = vmatpush2.bf16.msra.mxu0 %v770
  %830 = vmatprep.subr.bf16.mxu0 0
  %831 = vmatpush2.bf16.msra.mxu0 %v769
  %832 = vmatprep.subr.bf16.mxu0 0
  %833 = vmatpush2.bf16.msra.mxu0 %v768
  %834 = vmatprep.subr.bf16.mxu0 0
  %835 = vmatpush2.bf16.msra.mxu0 %v767
  %836 = vmatprep.subr.bf16.mxu0 0
  %837 = vmatpush2.bf16.msra.mxu0 %v766
  %838 = vmatprep.mubr.bf16.mxu0 %v609
  %839 = vmatmul.mubr.bf16.gmra.mxu0 %v608
  %v840 = vpop.f32.mrf.mxu0
  %v841 = vadd.f32 0.0, %v840
  %v842 = vpop.f32.mrf.mxu0
  %v843 = vpop.f32.mrf.mxu0
  %v844 = vadd.f32 0.0, %v843
  %v845 = vpop.f32.mrf.mxu0
  %846 = vmatprep.mubr.bf16.mxu0 %v612
  %847 = vmatmul.mubr.bf16.gmra.mxu0 %v611
  %v848 = vpop.f32.mrf.mxu0
  %v849 = vadd.f32 0.0, %v848
  %v850 = vpop.f32.mrf.mxu0
  %v851 = vpop.f32.mrf.mxu0
  %v852 = vadd.f32 0.0, %v851
  %v853 = vpop.f32.mrf.mxu0
  %854 = vdwg.mxu0
  %855 = vmatprep.subr.bf16.mxu0 0
  %856 = vmatpush1.bf16.msra.mxu0 %v781
  %857 = vmatprep.subr.bf16.mxu0 0
  %858 = vmatpush1.bf16.msra.mxu0 %v780
  %859 = vmatprep.subr.bf16.mxu0 0
  %860 = vmatpush1.bf16.msra.mxu0 %v779
  %861 = vmatprep.subr.bf16.mxu0 0
  %862 = vmatpush1.bf16.msra.mxu0 %v778
  %863 = vmatprep.subr.bf16.mxu0 0
  %864 = vmatpush1.bf16.msra.mxu0 %v777
  %865 = vmatprep.subr.bf16.mxu0 0
  %866 = vmatpush1.bf16.msra.mxu0 %v776
  %867 = vmatprep.subr.bf16.mxu0 0
  %868 = vmatpush1.bf16.msra.mxu0 %v775
  %869 = vmatprep.subr.bf16.mxu0 0
  %870 = vmatpush1.bf16.msra.mxu0 %v774
  %871 = vmatprep.subr.bf16.mxu0 0
  %872 = vmatpush2.bf16.msra.mxu0 0
  %873 = vmatprep.subr.bf16.mxu0 0
  %874 = vmatpush2.bf16.msra.mxu0 0
  %875 = vmatprep.subr.bf16.mxu0 0
  %876 = vmatpush2.bf16.msra.mxu0 0
  %877 = vmatprep.subr.bf16.mxu0 0
  %878 = vmatpush2.bf16.msra.mxu0 0
  %879 = vmatprep.subr.bf16.mxu0 0
  %880 = vmatpush2.bf16.msra.mxu0 0
  %881 = vmatprep.subr.bf16.mxu0 0
  %882 = vmatpush2.bf16.msra.mxu0 0
  %883 = vmatprep.subr.bf16.mxu0 0
  %884 = vmatpush2.bf16.msra.mxu0 0
  %885 = vmatprep.subr.bf16.mxu0 0
  %886 = vmatpush2.bf16.msra.mxu0 0
  %887 = vmatprep.mubr.bf16.mxu0 0
  %888 = vmatmul.mubr.bf16.gmra.mxu0 %v610
  %v889 = vpop.f32.mrf.mxu0
  %v890 = vadd.f32 %v841, %v889
  %v891 = vpop.f32.mrf.mxu0
  %v892 = vpop.f32.mrf.mxu0
  %v893 = vadd.f32 %v844, %v892
  %v894 = vpop.f32.mrf.mxu0
  %895 = vmatprep.mubr.bf16.mxu0 0
  %896 = vmatmul.mubr.bf16.gmra.mxu0 %v613
  %v897 = vpop.f32.mrf.mxu0
  %v898 = vadd.f32 %v849, %v897
  %v899 = vpop.f32.mrf.mxu0
  %v900 = vpop.f32.mrf.mxu0
  %v901 = vadd.f32 %v852, %v900
  %v902 = vpop.f32.mrf.mxu0
  %903 = vdwg.mxu0
  %v904 = vadd.f32 %v890, %v893
  %v905 = vadd.f32 %v904, %v898
  %v906 = vadd.f32 %v905, %v901
  %v907 = vrot.slane %v906, 4
  %v908 = vadd.f32 %v906, %v907
  %v909 = vrot.slane %v908, 2
  %v910 = vadd.f32 %v908, %v909
  %v911 = vrot.slane %v910, 1
  %v912 = vadd.f32 %v910, %v911
  %v913 = vmul.f32 %v890, %v890
  %v914 = vmul.f32 %v893, %v893
  %v915 = vmul.f32 %v898, %v898
  %v916 = vmul.f32 %v901, %v901
  %v917 = vadd.f32 %v913, %v914
  %v918 = vadd.f32 %v917, %v915
  %v919 = vadd.f32 %v918, %v916
  %v920 = vrot.slane %v919, 4
  %v921 = vadd.f32 %v919, %v920
  %v922 = vrot.slane %v921, 2
  %v923 = vadd.f32 %v921, %v922
  %v924 = vrot.slane %v923, 1
  %v925 = vadd.f32 %v923, %v924
  %v926 = vsel %vm36, %v912, %v925
  %927 = vmatprep.subr.mxu0 0.0
  %928 = vmatpush1.msra.mxu0 %v396
  %929 = vmatprep.subr.mxu0 0.0
  %930 = vmatpush1.msra.mxu0 %v395
  %931 = vmatprep.subr.mxu0 0.0
  %932 = vmatpush1.msra.mxu0 %v394
  %933 = vmatprep.subr.mxu0 0.0
  %934 = vmatpush1.msra.mxu0 %v393
  %935 = vmatprep.subr.mxu0 0.0
  %936 = vmatpush1.msra.mxu0 %v392
  %937 = vmatprep.subr.mxu0 0.0
  %938 = vmatpush1.msra.mxu0 %v391
  %939 = vmatprep.subr.mxu0 0.0
  %940 = vmatpush1.msra.mxu0 %v390
  %941 = vmatprep.subr.mxu0 0.0
  %942 = vmatpush1.msra.mxu0 %v389
  %943 = vmatprep.subr.mxu0 0.0
  %944 = vmatpush1.msra.mxu0 %v388
  %945 = vmatprep.subr.mxu0 0.0
  %946 = vmatpush1.msra.mxu0 %v387
  %947 = vmatprep.subr.mxu0 0.0
  %948 = vmatpush1.msra.mxu0 %v386
  %949 = vmatprep.subr.mxu0 0.0
  %950 = vmatpush1.msra.mxu0 %v385
  %951 = vmatprep.subr.mxu0 0.0
  %952 = vmatpush1.msra.mxu0 %v384
  %953 = vmatprep.subr.mxu0 0.0
  %954 = vmatpush1.msra.mxu0 %v383
  %955 = vmatprep.subr.mxu0 0.0
  %956 = vmatpush1.msra.mxu0 %v382
  %957 = vmatprep.subr.mxu0 0.0
  %958 = vmatpush1.msra.mxu0 %v381
  %959 = vmatprep.subr.mxu0 0.0
  %960 = vmatpush2.msra.mxu0 0.0
  %961 = vmatprep.subr.mxu0 0.0
  %962 = vmatpush2.msra.mxu0 0.0
  %963 = vmatprep.subr.mxu0 0.0
  %964 = vmatpush2.msra.mxu0 0.0
  %965 = vmatprep.subr.mxu0 0.0
  %966 = vmatpush2.msra.mxu0 0.0
  %967 = vmatprep.subr.mxu0 0.0
  %968 = vmatpush2.msra.mxu0 0.0
  %969 = vmatprep.subr.mxu0 0.0
  %970 = vmatpush2.msra.mxu0 0.0
  %971 = vmatprep.subr.mxu0 0.0
  %972 = vmatpush2.msra.mxu0 0.0
  %973 = vmatprep.subr.mxu0 0.0
  %974 = vmatpush2.msra.mxu0 0.0
  %975 = vmatprep.subr.mxu0 0.0
  %976 = vmatpush2.msra.mxu0 0.0
  %977 = vmatprep.subr.mxu0 0.0
  %978 = vmatpush2.msra.mxu0 0.0
  %979 = vmatprep.subr.mxu0 0.0
  %980 = vmatpush2.msra.mxu0 0.0
  %981 = vmatprep.subr.mxu0 0.0
  %982 = vmatpush2.msra.mxu0 0.0
  %983 = vmatprep.subr.mxu0 0.0
  %984 = vmatpush2.msra.mxu0 0.0
  %985 = vmatprep.subr.mxu0 0.0
  %986 = vmatpush2.msra.mxu0 0.0
  %987 = vmatprep.subr.mxu0 0.0
  %988 = vmatpush2.msra.mxu0 0.0
  %989 = vmatprep.subr.mxu0 0.0
  %990 = vmatpush2.msra.mxu0 0.0
  %991 = vmatprep.mubr.f32.mxu0 0.0
  %992 = vmatmul.mubr.f32.gmra.mxu0 %v926
  %v993 = vpop.f32.mrf.mxu0
  %v994 = vadd.f32 0.0, %v993
  %v995 = vpop.f32.mrf.mxu0
  %996 = vdwg.mxu0
  %v997 = vmul.f32 %v994, 0.001953125
  %v998 = vmul.f32 %v997, %v997
  %v1000 = vrot.slane %v998, 7
  %v1002 = vsub.f32 %v997, %v1000
  %v1003 = vadd.f32 %v1002, 1e-05
  %v1004 = vrsqrt.pop %v1003
  %v1006 = vrot.slane %v1004, 1
  %v1008 = vmul.f32 %v30, %v1006
  %v1009 = vmul.f32 %v997, %v1008
  %v1010 = vsub.f32 %v31, %v1009
  %v1012 = vrot.slane %v1010, 7
  %v1014 = vsel %vm36, %v1008, %v1012
  %v1016 = vsel %vm486, %v1014, 0
  %1018 = vmatprep.subr.mxu0 0.0
  %1019 = vmatpush1.msra.mxu0 0.0
  %1020 = vmatprep.subr.mxu0 0.0
  %1021 = vmatpush1.msra.mxu0 0.0
  %1022 = vmatprep.subr.mxu0 0.0
  %1023 = vmatpush1.msra.mxu0 0.0
  %1024 = vmatprep.subr.mxu0 0.0
  %1025 = vmatpush1.msra.mxu0 0.0
  %1026 = vmatprep.subr.mxu0 0.0
  %1027 = vmatpush1.msra.mxu0 0.0
  %1028 = vmatprep.subr.mxu0 0.0
  %1029 = vmatpush1.msra.mxu0 0.0
  %1030 = vmatprep.subr.mxu0 0.0
  %1031 = vmatpush1.msra.mxu0 0.0
  %1032 = vmatprep.subr.mxu0 0.0
  %1033 = vmatpush1.msra.mxu0 0.0
  %1034 = vmatprep.subr.mxu0 0.0
  %1035 = vmatpush1.msra.mxu0 0.0
  %1036 = vmatprep.subr.mxu0 0.0
  %1037 = vmatpush1.msra.mxu0 0.0
  %1038 = vmatprep.subr.mxu0 0.0
  %1039 = vmatpush1.msra.mxu0 0.0
  %1040 = vmatprep.subr.mxu0 0.0
  %1041 = vmatpush1.msra.mxu0 0.0
  %1042 = vmatprep.subr.mxu0 0.0
  %1043 = vmatpush1.msra.mxu0 0.0
  %1044 = vmatprep.subr.mxu0 0.0
  %1045 = vmatpush1.msra.mxu0 0.0
  %1046 = vmatprep.subr.mxu0 0.0
  %1047 = vmatpush1.msra.mxu0 0.0
  %1048 = vmatprep.subr.mxu0 0.0
  %1049 = vmatpush1.msra.mxu0 %v485
  %1050 = vmatprep.subr.mxu0 0.0
  %1051 = vmatpush2.msra.mxu0 0.0
  %1052 = vmatprep.subr.mxu0 0.0
  %1053 = vmatpush2.msra.mxu0 0.0
  %1054 = vmatprep.subr.mxu0 0.0
  %1055 = vmatpush2.msra.mxu0 0.0
  %1056 = vmatprep.subr.mxu0 0.0
  %1057 = vmatpush2.msra.mxu0 0.0
  %1058 = vmatprep.subr.mxu0 0.0
  %1059 = vmatpush2.msra.mxu0 0.0
  %1060 = vmatprep.subr.mxu0 0.0
  %1061 = vmatpush2.msra.mxu0 0.0
  %1062 = vmatprep.subr.mxu0 0.0
  %1063 = vmatpush2.msra.mxu0 0.0
  %1064 = vmatprep.subr.mxu0 0.0
  %1065 = vmatpush2.msra.mxu0 0.0
  %1066 = vmatprep.subr.mxu0 0.0
  %1067 = vmatpush2.msra.mxu0 0.0
  %1068 = vmatprep.subr.mxu0 0.0
  %1069 = vmatpush2.msra.mxu0 0.0
  %1070 = vmatprep.subr.mxu0 0.0
  %1071 = vmatpush2.msra.mxu0 0.0
  %1072 = vmatprep.subr.mxu0 0.0
  %1073 = vmatpush2.msra.mxu0 0.0
  %1074 = vmatprep.subr.mxu0 0.0
  %1075 = vmatpush2.msra.mxu0 0.0
  %1076 = vmatprep.subr.mxu0 0.0
  %1077 = vmatpush2.msra.mxu0 0.0
  %1078 = vmatprep.subr.mxu0 0.0
  %1079 = vmatpush2.msra.mxu0 0.0
  %1080 = vmatprep.subr.mxu0 0.0
  %1081 = vmatpush2.msra.mxu0 0.0
  %1082 = vmatprep.mubr.f32.mxu0 0.0
  %1083 = vmatmul.mubr.f32.gmra.mxu0 %v1016
  %v1084 = vpop.f32.mrf.mxu0
  %v1085 = vadd.f32 0.0, %v1084
  %v1086 = vpop.f32.mrf.mxu0
  %1087 = vdwg.mxu0
  %v1088 = vlaneseq
  %v1089 = vshrl.u32 %v1088, 7
  %v1090 = vsub.s32 0, %v1089
  %v1091 = vrot.slane %v1085, %v1090
  %v1092 = vmul.f32 %v890, %v1091
  %v1093 = vmul.f32 %v893, %v1091
  %v1094 = vmul.f32 %v898, %v1091
  %v1095 = vmul.f32 %v901, %v1091
  %v1096 = vlaneseq
  %v1097 = vshrl.u32 %v1096, 7
  %v1098 = vsub.s32 1, %v1097
  %v1099 = vrot.slane %v1085, %v1098
  %v1100 = vadd.f32 %v1092, %v1099
  %v1101 = vadd.f32 %v1093, %v1099
  %v1102 = vadd.f32 %v1094, %v1099
  %v1103 = vadd.f32 %v1095, %v1099
  %v1104 = vadd.f32 %v1100, %v24
  %v1105 = vadd.f32 %v1101, %v25
  %v1106 = vadd.f32 %v1102, %v26
  %v1107 = vadd.f32 %v1103, %v27
  %v1108 = vmax.f32 %v1104, 0.0
  %v1109 = vmax.f32 %v1105, 0.0
  %v1110 = vmax.f32 %v1106, 0.0
  %v1111 = vmax.f32 %v1107, 0.0
  %1112 = vst [vmem:[%s6] sm:$0xff] %v1108
  %1113 = vst [vmem:[%s6 + $0x8] sm:$0xff] %v1109
  %1114 = vst [vmem:[%s6 + $0x10] sm:$0xff] %v1110
  %1115 = vst [vmem:[%s6 + $0x18] sm:$0xff] %v1111
  // Predicated region
  $region26: #{resblock1_nchw.1} parent=0 // pred_check
    _
  $region27: #{resblock1_nchw.1} parent=0 // pred_check_branch
    %1117 = sbr.rel (0) target = $region29
  $region28: #{resblock1_nchw.1} parent=0 // pred_region
    _
  $region29: #{resblock1_nchw.1} parent=0 // pred_fallthru
    _
  // Predicated region
  $region30: #{resblock1_nchw.1} parent=0 // pred_check
    _
  $region31: #{resblock1_nchw.1} parent=0 // pred_check_branch
    %1119 = sbr.rel (0) target = $region33
  $region32: #{resblock1_nchw.1} parent=0 // pred_region
    _
  $region33: #{resblock1_nchw.1} parent=0 // pred_fallthru
    _

</llo_original>
